<compile_context>
chip_gen: v5e
topology: v5e:2x2
jax: 0.10.0
libtpu: 0.0.40
codegen_flags: <defaults>
</compile_context>

<pallas_src>
import math

import jax
import jax.numpy as jnp
from jax import lax
from jax.experimental import pallas as pl
from jax.experimental.pallas import tpu as pltpu


_TILE_BYTES = 4 * 1024 * 1024          # target bytes per streamed x/out tile
_VMEM_LIMIT_BYTES = 40 * 1024 * 1024   # x+out double buffers + mask + temporaries
_MIN_GRID_STEPS = 4                    # >=2 lets v7x's two TCs split "parallel" axes
_MAX_FOLD = 16                         # max T rows folded into the lane axis (path 2)
_MAX_EXPAND_BYTES = 512 * 1024         # cap on the resident 0/1 expansion matrix


def _round_up(n, m):
    return ((n + m - 1) // m) * m


def _sublane(dtype):
    # native sublane pack: 8 rows f32, 16 bf16, 32 int8/fp8
    return max(8, 32 // jnp.dtype(dtype).itemsize)


def _choose_rows(rows, row_bytes, s, other_steps):
    """Pick the T-tile: fill ~_TILE_BYTES, stay a multiple of `s` (BlockSpec sublane
    rule for the 2-D mask block), and keep >= _MIN_GRID_STEPS grid steps when legal."""
    if rows <= s:
        return rows
    fit = _TILE_BYTES // max(1, row_bytes)
    tile = rows if fit >= rows else max(s, (fit // s) * s)
    if other_steps * pl.cdiv(rows, tile) < _MIN_GRID_STEPS:
        want = pl.cdiv(_MIN_GRID_STEPS, other_steps)
        tile = min(tile, max(s, _round_up(pl.cdiv(rows, want), s)))
    return min(tile, rows)


# -----------------------------------------------------------------------------
# Kernels: pure streaming multiplies; the mask broadcast stays on-chip.
# -----------------------------------------------------------------------------

def _lane_kernel(x_ref, m_ref, o_ref):
    """x/o: (tile_t, tile_l) with tile_l % H == 0; m: (tile_t, H)."""
    h = m_ref.shape[1]
    n_rep = x_ref.shape[1] // h
    if n_rep == 1:
        o_ref[...] = x_ref[...] * m_ref[...]
    else:
        # Chunked multiply: 128-aligned lane slices, no large temporaries, constant code
        # size regardless of B.  Loop/VPU work is hidden under the HBM-bound DMA.
        def body(j, carry):
            sl = pl.ds(pl.multiple_of(j * h, 128), h)
            o_ref[:, sl] = x_ref[:, sl] * m_ref[...]
            return carry

        lax.fori_loop(0, n_rep, body, 0)


def _fold_kernel(x_ref, m_ref, p_ref, o_ref):
    """x/o: (tile_t, k*B*H); m: (tile_t, k*H); p: constant 0/1 (k*H, k*B*H).

    m @ p replicates each H-chunk of the mask B times along the lane axis.  The MXU is
    idle in this kernel and the product is exact (operands are 0, 1, 1/(1-p))."""
    m_full = jnp.dot(m_ref[...], p_ref[...], preferred_element_type=jnp.float32)
    o_ref[...] = x_ref[...] * m_full.astype(o_ref.dtype)


def _bcast3d_kernel(x_ref, m_ref, o_ref):
    """x/o: (tile_t, tile_b, H); m: (tile_t, H) broadcast across the sublane (B) axis."""
    o_ref[...] = x_ref[...] * m_ref[...][:, None, :]


# -----------------------------------------------------------------------------
# Wrapper
# -----------------------------------------------------------------------------

def _locked_dropout_impl(x, seed, dropout, training):
    if (not training) or dropout == 0.0:
        return x

    T, B, H = x.shape
    dtype = x.dtype
    itemsize = jnp.dtype(dtype).itemsize
    s = _sublane(dtype)
    keep_prob = 1.0 - dropout
    L = B * H

    # One Bernoulli draw per (t, h), shared across B ("locked"), pre-scaled by 1/(1-p)
    # in x's dtype — exactly the module's m.bernoulli_(1 - p).div_(1 - p).
    key = jax.random.PRNGKey(seed)
    keep = jax.random.bernoulli(key, p=keep_prob, shape=(T, H))
    scale = jnp.asarray(1.0 / keep_prob, dtype=dtype)
    mask = jnp.where(keep, scale, jnp.zeros((), dtype=dtype))          # (T, H) only

    # ---- Path 1: lane-dense 2-D streaming (H already a multiple of 128) ----
    if H % 128 == 0:
        x2 = x.reshape(T, L)                                 # metadata-only reshape
        if L * itemsize * s <= _TILE_BYTES:
            tile_l = L                                       # whole row per tile
        else:                                                # huge rows: tile lanes too
            units = max(1, _TILE_BYTES // (s * H * itemsize))
            tile_l = min(L, units * H)                       # multiple of H and of 128
        l_steps = pl.cdiv(L, tile_l)
        tile_t = _choose_rows(T, tile_l * itemsize, s, l_steps)
        grid = (pl.cdiv(T, tile_t), l_steps)
        cost = pl.CostEstimate(
            flops=T * L, transcendentals=0,
            bytes_accessed=(2 * T * L + l_steps * T * H) * itemsize)
        out2 = pl.pallas_call(
            _lane_kernel,
            out_shape=jax.ShapeDtypeStruct((T, L), dtype),
            grid=grid,
            in_specs=[pl.BlockSpec((tile_t, tile_l), lambda t, l: (t, l)),
                      pl.BlockSpec((tile_t, H), lambda t, l: (t, 0))],
            out_specs=pl.BlockSpec((tile_t, tile_l), lambda t, l: (t, l)),
            compiler_params=pltpu.CompilerParams(
                dimension_semantics=("parallel", "parallel"),
                vmem_limit_bytes=_VMEM_LIMIT_BYTES),
            cost_estimate=cost,
        )(x2, mask)
        return out2.reshape(T, B, H)

    # ---- Path 2: fold T rows into the lane axis so stores are 128-lane dense ----
    fold = None
    if jnp.issubdtype(dtype, jnp.floating):
        k0 = 128 // math.gcd(L, 128)          # smallest k with (k*L) % 128 == 0
        k = k0
        while k <= _MAX_FOLD:
            if T % k == 0 and (k * H) * (k * L) * itemsize <= _MAX_EXPAND_BYTES:
                fold = k
                break
            k += k0

    if fold is not None:
        k = fold
        W = k * L
        rows = T // k
        x2 = x.reshape(rows, W)                              # metadata-only
        m2 = mask.reshape(rows, k * H)                       # still tiny (no B extent)
        # 0/1 expansion matrix: P[j*H + h, j*L + b*H + h] = 1
        r = jnp.arange(k * H)
        c = jnp.arange(W)
        P = ((r[:, None] // H == c[None, :] // L)
             & (r[:, None] % H == c[None, :] % H)).astype(dtype)
        tile_t = _choose_rows(rows, W * itemsize, s, 1)
        grid = (pl.cdiv(rows, tile_t),)
        cost = pl.CostEstimate(
            flops=T * L + 2 * rows * (k * H) * W, transcendentals=0,
            bytes_accessed=(2 * T * L + T * H + (k * H) * W) * itemsize)
        out2 = pl.pallas_call(
            _fold_kernel,
            out_shape=jax.ShapeDtypeStruct((rows, W), dtype),
            grid=grid,
            in_specs=[pl.BlockSpec((tile_t, W), lambda t: (t, 0)),
                      pl.BlockSpec((tile_t, k * H), lambda t: (t, 0)),
                      pl.BlockSpec((k * H, W), lambda t: (0, 0))],  # stays resident
            out_specs=pl.BlockSpec((tile_t, W), lambda t: (t, 0)),
            compiler_params=pltpu.CompilerParams(
                dimension_semantics=("parallel",),
                vmem_limit_bytes=_VMEM_LIMIT_BYTES),
            cost_estimate=cost,
        )(x2, m2, P)
        return out2.reshape(T, B, H)

    # ---- Path 3: ragged-H fallback — natural layout, sublane broadcast over B ----
    # TODO(synk): lane-dense relayout here needs lane-splitting reshapes; kept as masked
    # (sub-128 lane) stores since it only affects ragged hidden sizes.
    lane_bytes = _round_up(H, 128) * itemsize                # padded (., H) lane row
    if _round_up(B, s) * lane_bytes * s <= _TILE_BYTES:
        tile_b = B
    else:                                                    # huge B*H rows: tile B too
        fit_b = max(1, _TILE_BYTES // (lane_bytes * s))
        tile_b = min(B, max(s, (fit_b // s) * s))
    b_steps = pl.cdiv(B, tile_b)
    row_bytes = _round_up(tile_b, s) * lane_bytes            # padded VMEM bytes per T row
    tile_t = _choose_rows(T, row_bytes, s, b_steps)
    grid = (pl.cdiv(T, tile_t), b_steps)
    cost = pl.CostEstimate(
        flops=T * L, transcendentals=0,
        bytes_accessed=(2 * T * L + b_steps * T * H) * itemsize)
    return pl.pallas_call(
        _bcast3d_kernel,
        out_shape=jax.ShapeDtypeStruct((T, B, H), dtype),
        grid=grid,
        in_specs=[pl.BlockSpec((tile_t, tile_b, H), lambda t, b: (t, b, 0)),
                  pl.BlockSpec((tile_t, H), lambda t, b: (t, 0))],
        out_specs=pl.BlockSpec((tile_t, tile_b, H), lambda t, b: (t, b, 0)),
        compiler_params=pltpu.CompilerParams(
            dimension_semantics=("parallel", "parallel"),
            vmem_limit_bytes=_VMEM_LIMIT_BYTES),
        cost_estimate=cost,
    )(x, mask)


_locked_dropout_jit = jax.jit(_locked_dropout_impl, static_argnums=(2, 3))


def locked_dropout(x, dropout, seed, training=True):
    """Functional equivalent of LockedDropout(dropout).forward(x); x is (T, B, H).

    The whole op (mask draw + reshapes + Pallas kernel) runs under a single jax.jit."""
    seed = jnp.asarray(seed, dtype=jnp.uint32)
    return _locked_dropout_jit(x, seed, float(dropout), bool(training))


if __name__ == "__main__":
    dropout_p = 0.25
    scale = 1.0 / (1.0 - dropout_p)

    def check(x, out):
        x = jnp.asarray(x, jnp.float32)
        out = jnp.asarray(out, jnp.float32)
        safe_x = jnp.where(x == 0, 1.0, x)
        ratio = out / safe_x                                           # (T, B, H)
        ok_vals = bool(jnp.all(jnp.isclose(ratio, 0.0, atol=1e-5)
                               | jnp.isclose(ratio, scale, atol=1e-4)))
        locked = bool(jnp.all(jnp.isclose(ratio, ratio[:, :1, :], atol=1e-4)))
        return ok_vals, locked

    k1, k2, k3 = jax.random.split(jax.random.PRNGKey(0), 3)

    # (a) Tiny BiLSTM-ish shape (seq=8, batch=2, hidden=32): H < 128 -> lane-folded path
    #     with the constant 0/1 expansion matmul (lane width 128, no full-size mask).
    x_a = jax.random.normal(k1, (8, 2, 32), dtype=jnp.float32)
    out_a = jax.block_until_ready(locked_dropout(x_a, dropout_p, seed=42, training=True))
    ok, locked = check(x_a, out_a)
    assert out_a.shape == x_a.shape
    assert ok and locked, "fold path: values must be 0 or x/(1-p), shared across B"

    # (b) H multiple of 128 -> lane-dense 2-D streaming path (>=2 grid steps).
    x_b = jax.random.normal(k2, (16, 8, 128), dtype=jnp.float32)
    out_b = jax.block_until_ready(locked_dropout(x_b, dropout_p, seed=7, training=True))
    ok, locked = check(x_b, out_b)
    assert ok and locked, "lane path: values must be 0 or x/(1-p), shared across B"

    # (c) Ragged H with no usable fold -> 3-D sublane-broadcast fallback.
    x_c = jax.random.normal(k3, (6, 3, 48), dtype=jnp.float32)
    out_c = jax.block_until_ready(locked_dropout(x_c, dropout_p, seed=3, training=True))
    ok, locked = check(x_c, out_c)
    assert ok and locked, "3-D path: values must be 0 or x/(1-p), shared across B"

    # Eval mode is identity, as in the PyTorch module.
    out_eval = jax.block_until_ready(locked_dropout(x_a, dropout_p, seed=42, training=False))
    assert bool(jnp.array_equal(out_eval, x_a))

    print("KERNEL_OK")
</pallas_src>

<mosaic_0001>
module attributes {stable_mosaic.version = 11 : i64} {
  func.func @_fold_kernel(%arg0: i32, %arg1: memref<4x128xf32, #tpu.memory_space<vmem>>, %arg2: memref<4x64xf32, #tpu.memory_space<vmem>>, %arg3: memref<64x128xf32, #tpu.memory_space<vmem>>, %arg4: memref<4x128xf32, #tpu.memory_space<vmem>>) attributes {dimension_semantics = [#tpu.dimension_semantics<parallel>], iteration_bounds = array<i64: 1>, scalar_prefetch = 0 : i64, scratch_operands = 0 : i64, tpu.core_type = #tpu.core_type<tc>, window_params = [{transform_indices = @transform_0, window_bounds = array<i64: 4, 128>}, {transform_indices = @transform_1, window_bounds = array<i64: 4, 64>}, {pipeline_mode = #tpu.pipeline_mode<synchronous>, transform_indices = @transform_2, window_bounds = array<i64: 64, 128>}, {transform_indices = @transform_3, window_bounds = array<i64: 4, 128>}]} {
    %c0 = arith.constant 0 : index
    %c0_0 = arith.constant 0 : index
    %0 = vector.load %arg2[%c0, %c0_0] : memref<4x64xf32, #tpu.memory_space<vmem>>, vector<4x64xf32>
    %c0_1 = arith.constant 0 : index
    %c0_2 = arith.constant 0 : index
    %1 = vector.load %arg3[%c0_1, %c0_2] : memref<64x128xf32, #tpu.memory_space<vmem>>, vector<64x128xf32>
    %cst = arith.constant dense<0.000000e+00> : vector<4x128xf32>
    %2 = tpu.matmul %0, %1, %cst {dimension_numbers = #tpu.dot_dimension_numbers<[1], [0], [0], [1], [0, 0, 1, 1], [], []>} : vector<4x64xf32>, vector<64x128xf32>, vector<4x128xf32> -> vector<4x128xf32>
    %c0_3 = arith.constant 0 : index
    %c0_4 = arith.constant 0 : index
    %3 = vector.load %arg1[%c0_3, %c0_4] : memref<4x128xf32, #tpu.memory_space<vmem>>, vector<4x128xf32>
    %4 = arith.mulf %3, %2 : vector<4x128xf32>
    %c0_5 = arith.constant 0 : index
    %c0_6 = arith.constant 0 : index
    %5 = vector.load %arg4[%c0_5, %c0_6] : memref<4x128xf32, #tpu.memory_space<vmem>>, vector<4x128xf32>
    tpu.vector_store %arg4[%c0_5, %c0_6], %4 {strides = array<i32>} : memref<4x128xf32, #tpu.memory_space<vmem>>, vector<4x128xf32>,
    return
  }
  func.func @transform_0(%arg0: i32) -> (i32, i32) {
    %c0_i32 = arith.constant 0 : i32
    %c0_i32_0 = arith.constant 0 : i32
    return %arg0, %c0_i32 : i32, i32
  }
  func.func @transform_1(%arg0: i32) -> (i32, i32) {
    %c0_i32 = arith.constant 0 : i32
    %c0_i32_0 = arith.constant 0 : i32
    return %arg0, %c0_i32 : i32, i32
  }
  func.func @transform_2(%arg0: i32) -> (i32, i32) {
    %c0_i32 = arith.constant 0 : i32
    %c0_i32_0 = arith.constant 0 : i32
    %c0_i32_1 = arith.constant 0 : i32
    return %c0_i32, %c0_i32_0 : i32, i32
  }
  func.func @transform_3(%arg0: i32) -> (i32, i32) {
    %c0_i32 = arith.constant 0 : i32
    %c0_i32_0 = arith.constant 0 : i32
    return %arg0, %c0_i32 : i32, i32
  }
}

</mosaic_0001>

<llo_original>
// kernel: _locked_dropout_impl.1
$region0: #{_locked_dropout_impl.1}
  #allocation0 [shape = 'u32[]', space=smem, size = 0x4, offset = 0x4, fixed_abs, tag = 'smem constant byte address 0x4 - core index']
  #allocation1 [shape = 'u32[72,128]{1,0:T(1,128)}', space=vmem, size = 0x9000, scoped, tag = 'internal scratch']
  %s0 = inlined_call_operand.vmem [shape: f32[4,128], index: 0, kind: input, shape index: {}]
  %s1 = inlined_call_operand.vmem [shape: f32[4,64], index: 1, kind: input, shape index: {}]
  %s2 = inlined_call_operand.vmem [shape: f32[64,128], index: 2, kind: input, shape index: {}]
  %s3 = inlined_call_operand.vmem [shape: f32[4,128], index: 3, kind: output, shape index: {}]
  %s4 = sld [smem:[#allocation0]]
  $region22: #{_locked_dropout_impl.1} parent=0
    _
  %s6 = ssub.s32 1, %s4
  %s7 = scalar_select 0, %s6, %s4
  // Predicated region
  $region2: #{_locked_dropout_impl.1} parent=0 // pred_check
    _
  $region3: #{_locked_dropout_impl.1} parent=0 // pred_check_branch
    %9 = sbr.rel (0) target = $region5
  $region4: #{_locked_dropout_impl.1} parent=0 // pred_region
    _
  $region5: #{_locked_dropout_impl.1} parent=0 // pred_fallthru
    _
  // Predicated region
  $region6: #{_locked_dropout_impl.1} parent=0 // pred_check
    _
  $region7: #{_locked_dropout_impl.1} parent=0 // pred_check_branch
    %11 = sbr.rel (0) target = $region9
  $region8: #{_locked_dropout_impl.1} parent=0 // pred_region
    _
  $region9: #{_locked_dropout_impl.1} parent=0 // pred_fallthru
    _
  // Predicated region
  $region10: #{_locked_dropout_impl.1} parent=0 // pred_check
    _
  $region11: #{_locked_dropout_impl.1} parent=0 // pred_check_branch
    %13 = sbr.rel (0) target = $region13
  $region12: #{_locked_dropout_impl.1} parent=0 // pred_region
    _
  $region13: #{_locked_dropout_impl.1} parent=0 // pred_fallthru
    _
  %v14 = vld [vmem:[%s1] sm:$0xf]
  %v15 = vld [vmem:[%s2] sm:$0xff]
  %v16 = vld [vmem:[%s2 + $0x8] sm:$0xff]
  %v17 = vld [vmem:[%s2 + $0x10] sm:$0xff]
  %v18 = vld [vmem:[%s2 + $0x18] sm:$0xff]
  %v19 = vld [vmem:[%s2 + $0x20] sm:$0xff]
  %v20 = vld [vmem:[%s2 + $0x28] sm:$0xff]
  %v21 = vld [vmem:[%s2 + $0x30] sm:$0xff]
  %v22 = vld [vmem:[%s2 + $0x38] sm:$0xff]
  %vm23 = vcmask 523264
  %v25 = vsel %vm23, %v14, 0
  %27 = vmatpush.msra.mxu0 0.0
  %28 = vmatpush.msra.mxu0 0.0
  %29 = vmatpush.msra.mxu0 0.0
  %30 = vmatpush.msra.mxu0 0.0
  %31 = vmatpush.msra.mxu0 0.0
  %32 = vmatpush.msra.mxu0 0.0
  %33 = vmatpush.msra.mxu0 0.0
  %34 = vmatpush.msra.mxu0 0.0
  %35 = vmatpush.msra.mxu0 %v22
  %36 = vmatpush.msra.mxu0 %v21
  %37 = vmatpush.msra.mxu0 %v20
  %38 = vmatpush.msra.mxu0 %v19
  %39 = vmatpush.msra.mxu0 %v18
  %40 = vmatpush.msra.mxu0 %v17
  %41 = vmatpush.msra.mxu0 %v16
  %42 = vmatpush.msra.mxu0 %v15
  %43 = vmatmul.f32.gmra.mxu0 %v25
  %v44 = vpop.f32.mrf.mxu0
  %v45 = vadd.f32 0.0, %v44
  %46 = vdwg.mxu0
  %v47 = vld [vmem:[%s0] sm:$0xf]
  %v48 = vmul.f32 %v47, %v45
  %49 = vst [vmem:[%s3] sm:$0xf] %v48
  // Predicated region
  $region14: #{_locked_dropout_impl.1} parent=0 // pred_check
    _
  $region15: #{_locked_dropout_impl.1} parent=0 // pred_check_branch
    %51 = sbr.rel (0) target = $region17
  $region16: #{_locked_dropout_impl.1} parent=0 // pred_region
    _
  $region17: #{_locked_dropout_impl.1} parent=0 // pred_fallthru
    _
  // Predicated region
  $region18: #{_locked_dropout_impl.1} parent=0 // pred_check
    _
  $region19: #{_locked_dropout_impl.1} parent=0 // pred_check_branch
    %53 = sbr.rel (0) target = $region21
  $region20: #{_locked_dropout_impl.1} parent=0 // pred_region
    _
  $region21: #{_locked_dropout_impl.1} parent=0 // pred_fallthru
    _

</llo_original>
